<compile_context>
chip_gen: v7x
topology: tpu7x:2x2x1
jax: 0.10.0
libtpu: 0.0.40
codegen_flags: <defaults>
</compile_context>

<pallas_src>
import functools
import math

import jax
import jax.numpy as jnp
from jax import lax
from jax.experimental import pallas as pl
from jax.experimental.pallas import tpu as pltpu


# MXU operand dtype (accumulation is always f32).  bf16 is the throughput path
# on v6e/v7x; set to jnp.float32 for bit-exact-f32 matmuls.
MXU_DTYPE = jnp.bfloat16

_LN2 = math.log(2.0)

# Single generation-safe VMEM budget: v7x has 64 MiB physical per TC, v5e/v6e
# have 128 MiB.  Keep the assert strictly below the compiler limit.
VMEM_BUDGET_BYTES = 40 * 1024 * 1024
VMEM_LIMIT_BYTES = 48 * 1024 * 1024


def _round_up(x, m):
    return (x + m - 1) // m * m


def _softplus(x):
    # numerically stable log(1 + exp(x)) -- exp/log1p run on the EUP slot
    return jnp.maximum(x, 0.0) + jnp.log1p(jnp.exp(-jnp.abs(x)))


def _pad_to(x, shape, value=0.0):
    """Zero/value-pad `x` up to `shape`; no-op (no copy) if already aligned."""
    pads = [(0, t - s) for s, t in zip(x.shape, shape)]
    if not any(hi for _, hi in pads):
        return x
    return jnp.pad(x, pads, constant_values=value)


def _lsm_score_kernel(P_pad, N_pad, n_zero_rows,
                      inv_ref, px_ref, nx_ref, wt_ref, out_ref):
    """Scores for a block of UB users.

    inv_ref : VMEM (UB, 1)          f32   1 / (nu_u ** alpha)
    px_ref  : VMEM (UB, P_pad, d_pad) f32  zero-padded positive samples
    nx_ref  : VMEM (UB, N_pad, d_pad) f32  zero-padded negative samples
    wt_ref  : VMEM (d_pad, c_pad)   bf16  padded W^T (resident across steps)
    out_ref : VMEM (UB, c_pad)      f32   gamma for this user block
    """
    pX = px_ref[...]                               # (UB, P_pad, d_pad) f32
    nX = nx_ref[...]                               # (UB, N_pad, d_pad) f32
    UB = pX.shape[0]
    d_pad = pX.shape[2]
    S_pad = P_pad + N_pad

    # Per-user feature transforms (f32 VPU math); padded rows stay exactly 0.
    px_sum = jnp.sum(pX, axis=1, keepdims=True)    # (UB, 1, d_pad)
    pos_feat = pX * (px_sum - pX)                  # (UB, P_pad, d_pad)
    nx_sum = jnp.sum(nX, axis=1, keepdims=True)    # (UB, 1, d_pad)
    neg_feat = nx_sum * nX                         # (UB, N_pad, d_pad)

    # Merge all users' samples into one MXU operand; the reshape only merges
    # leading dims (S_pad is a multiple of 8) so it is layout-free in f32.
    feat = jnp.concatenate([pos_feat, neg_feat], axis=1)      # (UB, S_pad, d_pad)
    feat2d = feat.reshape(UB * S_pad, d_pad).astype(wt_ref.dtype)

    # Single canonical (M,K)x(K,N) MXU call per grid step (W^T pre-transposed,
    # pre-cast in the wrapper; no per-step work on the resident operand).
    scores2d = jnp.dot(feat2d, wt_ref[...],
                       preferred_element_type=jnp.float32)    # (UB*S_pad, c_pad)
    c_pad = scores2d.shape[1]
    scores = scores2d.reshape(UB, S_pad, c_pad)                # (UB, S_pad, c_pad)

    inv_n = inv_ref[...]                                       # (UB, 1)

    # pos term: (sum_p raw_pos) * inv_n   (neighbor folded on the cheap side)
    pos_term = jnp.sum(scores[:, :P_pad, :], axis=1) * inv_n   # (UB, c_pad)

    # softplus term: alpha = raw_scores * inv_n^2 (divided by neighbor twice).
    inv_n2 = jnp.reshape(inv_n * inv_n, (UB, 1, 1))
    sp = _softplus(scores * inv_n2)                            # (UB, S_pad, c_pad)
    sp_term = jnp.sum(sp, axis=1)                              # (UB, c_pad)
    if n_zero_rows:
        # Padded sample rows have exactly-zero scores -> softplus == ln 2
        # exactly; subtract the constant instead of masking with iota/where.
        sp_term = sp_term - jnp.float32(n_zero_rows * _LN2)

    out_ref[...] = pos_term - sp_term


def lsm_score_batched(pX_b, nX_b, W, inv_neighbor):
    """Batched per-user scores.

    pX_b : (U, P, d)   nX_b : (U, N, d)   W : (c, d)   inv_neighbor : (U,)
    returns gamma : (U, c)
    """
    U, P, d = pX_b.shape
    _, N, _ = nX_b.shape
    c = W.shape[0]

    d_pad = _round_up(d, 128)
    c_pad = _round_up(c, 128)              # lane-dense gamma output
    P_pad = _round_up(max(P, 1), 8)
    N_pad = _round_up(max(N, 1), 8)
    S_pad = P_pad + N_pad

    # --- pick the user block size UB ----------------------------------------
    # Target matmul M = UB * S_pad >= 256 (v6e/v7x MXU; >=128 also fine on
    # v5e), UB a multiple of 8, capped at 32 and at the padded user count;
    # shrink if the VMEM budget is exceeded.
    UB = _round_up(min(32, max(8, -(-256 // S_pad))), 8)
    UB = min(UB, _round_up(U, 8))

    def _vmem_bytes(ub):
        in_b = 2 * ub * (P_pad + N_pad) * d_pad * 4            # dbl-buffered samples
        w_b = 2 * d_pad * c_pad * jnp.dtype(MXU_DTYPE).itemsize
        out_b = 2 * ub * c_pad * 4
        tmp = (ub * S_pad * d_pad * (4 + 4 + 2)                # feat f32 + bf16 copy
               + ub * S_pad * c_pad * 4 * 3)                   # scores / alpha / sp
        return in_b + w_b + out_b + tmp

    while UB > 8 and _vmem_bytes(UB) > VMEM_BUDGET_BYTES:
        UB -= 8
    assert _vmem_bytes(UB) <= VMEM_BUDGET_BYTES, (
        "per-block working set does not fit the VMEM budget; "
        "tile the sample axis (see TODO at top of file)")

    U_pad = _round_up(U, UB)

    # --- pad (fuseable jnp.pad inside the jit; skipped when already aligned) -
    pXp = _pad_to(pX_b.astype(jnp.float32), (U_pad, P_pad, d_pad))
    nXp = _pad_to(nX_b.astype(jnp.float32), (U_pad, N_pad, d_pad))
    # Resident operand: padded, pre-transposed, pre-cast ONCE in the wrapper.
    Wt = _pad_to(jnp.transpose(W).astype(jnp.float32),
                 (d_pad, c_pad)).astype(MXU_DTYPE)             # (d_pad, c_pad)
    inv_p = _pad_to(inv_neighbor.astype(jnp.float32).reshape(U, 1),
                    (U_pad, 1), value=1.0)                     # padded users: 1.0

    n_zero_rows = (P_pad - P) + (N_pad - N)

    grid_spec = pltpu.PrefetchScalarGridSpec(
        num_scalar_prefetch=0,
        grid=(U_pad // UB,),
        in_specs=[
            pl.BlockSpec((UB, 1), lambda g: (g, 0)),
            pl.BlockSpec((UB, P_pad, d_pad), lambda g: (g, 0, 0)),
            pl.BlockSpec((UB, N_pad, d_pad), lambda g: (g, 0, 0)),
            # same block index for every step -> W^T stays resident in VMEM
            pl.BlockSpec((d_pad, c_pad), lambda g: (0, 0)),
        ],
        out_specs=pl.BlockSpec((UB, c_pad), lambda g: (g, 0)),
    )

    gamma_pad = pl.pallas_call(
        functools.partial(_lsm_score_kernel, P_pad, N_pad, n_zero_rows),
        out_shape=jax.ShapeDtypeStruct((U_pad, c_pad), jnp.float32),
        grid_spec=grid_spec,
        compiler_params=pltpu.CompilerParams(
            dimension_semantics=("parallel",),     # shard user blocks across TCs
            vmem_limit_bytes=VMEM_LIMIT_BYTES,
        ),
    )(inv_p, pXp, nXp, Wt)

    return gamma_pad[:U, :c]


_lsm_score_batched_jit = jax.jit(lsm_score_batched)


class LSM:
    """JAX/Pallas re-implementation of the PyTorch LSM module (forward path)."""

    def __init__(self, R, alpha, c, m, d, key):
        self.alpha = float(alpha)
        self.c = c
        self.R = jnp.asarray(R, jnp.float32)                 # (m, n)
        self.m_dim, self.n = self.R.shape
        k1, k2 = jax.random.split(key)
        # deterministic "torch.rand"-like init
        self.pi = jax.random.uniform(k1, (c, m), dtype=jnp.float32) / c   # (c, m)
        self.W = jax.random.uniform(k2, (c, d), dtype=jnp.float32)        # (c, d)
        # Precompute 1 / (nu ** alpha) for every user on device (no host sync
        # per score() call).
        nu = jnp.sum(self.R, axis=-1)                        # (m,)
        self.inv_neighbor = 1.0 / jnp.power(nu, self.alpha)  # (m,)

    # ---- scoring -----------------------------------------------------------
    def score(self, pX, nX, u):
        inv_n = jnp.reshape(self.inv_neighbor[u], (1,))
        gamma = _lsm_score_batched_jit(pX[None], nX[None], self.W, inv_n)
        return gamma[0]                                      # (c,)

    def score_batch(self, pX_b, nX_b, users):
        """pX_b: (U, P, d), nX_b: (U, N, d), users: (U,) ints -> (U, c)."""
        inv_n = self.inv_neighbor[jnp.asarray(users)]
        return _lsm_score_batched_jit(pX_b, nX_b, self.W, inv_n)

    # ---- EM steps ----------------------------------------------------------
    def expect(self, pX, nX, u):
        gamma = self.score(pX, nX, u)
        new_col = jax.nn.softmax(gamma - 1.0, axis=0)
        # PyTorch mutates self.pi.data[:, u] in place and returns None; here we
        # update functionally and return the updated column for convenience.
        self.pi = self.pi.at[:, u].set(new_col)
        return new_col

    def maximum(self, pX, nX, u):
        pi_u = jax.lax.stop_gradient(self.pi[:, u])
        s = self.score(pX, nX, u)
        return -(pi_u @ s)

    def forward(self, pX, nX, u, expect=True):
        return self.expect(pX, nX, u) if expect else self.maximum(pX, nX, u)

    def predict(self, x, tX, u):
        # plain-JAX glue (not part of the forward hot path)
        w = self.pi[:, u].T @ self.W
        return (x * w) @ tX.T


# ---- pure-JAX reference (mirrors the PyTorch score()) -----------------------
def _lsm_score_ref(pX, nX, W, neighbor):
    px = jnp.sum(pX, axis=0)
    pos = pX * (px - pX)
    pos = jnp.sum(pos[None, :, :] * W[:, None, :], -1) / neighbor
    nx = jnp.sum(nX, axis=0)
    neg = nx * nX
    neg = jnp.sum(neg[None, :, :] * W[:, None, :], -1) / neighbor
    a = jnp.concatenate([pos, neg], -1) / neighbor
    return jnp.sum(pos, -1) - jnp.sum(_softplus(a), -1)


if __name__ == "__main__":
    key = jax.random.PRNGKey(0)
    k_r, k_px, k_nx, k_pxb, k_nxb, k_model = jax.random.split(key, 6)

    # small shapes: m=8 users, n=16 items, c=4 clusters, d=32 features,
    # P=8 positive samples, N=8 negative samples, batch of U=4 users
    m, n, c, d, P, N, U = 8, 16, 4, 32, 8, 8, 4
    alpha = 0.5
    u = 3

    R = (jax.random.uniform(k_r, (m, n)) > 0.5).astype(jnp.float32)
    R = R.at[:, 0].set(1.0)                           # make sure every nu > 0
    pX = jax.random.normal(k_px, (P, d), dtype=jnp.float32)
    nX = jax.random.normal(k_nx, (N, d), dtype=jnp.float32)
    pX_b = jax.random.normal(k_pxb, (U, P, d), dtype=jnp.float32)
    nX_b = jax.random.normal(k_nxb, (U, N, d), dtype=jnp.float32)

    model = LSM(R, alpha=alpha, c=c, m=m, d=d, key=k_model)

    # --- single-user forward, expect=True  (E-step: updates pi[:, u]) -------
    new_pi_col = model.forward(pX, nX, u, expect=True)
    jax.block_until_ready(new_pi_col)

    # --- single-user forward, expect=False (M-step objective: scalar) -------
    loss = model.forward(pX, nX, u, expect=False)
    jax.block_until_ready(loss)

    # --- batched users in one gridded pallas_call ----------------------------
    users = jnp.arange(U, dtype=jnp.int32)
    gamma_b = model.score_batch(pX_b, nX_b, users)
    jax.block_until_ready(gamma_b)

    # --- sanity check against the pure-JAX reference (scale-relative bound,
    #     loose enough for the bf16 MXU path) ---------------------------------
    neighbor_u = float(math.pow(float(jnp.sum(R[u])), alpha))
    gamma_ref = _lsm_score_ref(pX, nX, model.W, neighbor_u)
    gamma_ker = model.score(pX, nX, u)
    err = float(jnp.max(jnp.abs(gamma_ker - gamma_ref)))
    scale = 1.0 + float(jnp.max(jnp.abs(gamma_ref)))
    assert err < 0.05 * scale, f"score mismatch: err={err}, scale={scale}"

    # batched kernel vs per-user reference
    gamma_ref_b = jnp.stack([
        _lsm_score_ref(pX_b[i], nX_b[i], model.W,
                       float(math.pow(float(jnp.sum(R[i])), alpha)))
        for i in range(U)])
    err_b = float(jnp.max(jnp.abs(gamma_b - gamma_ref_b)))
    scale_b = 1.0 + float(jnp.max(jnp.abs(gamma_ref_b)))
    assert err_b < 0.05 * scale_b, f"batched mismatch: err={err_b}, scale={scale_b}"

    assert new_pi_col.shape == (c,)
    assert loss.shape == ()
    assert gamma_b.shape == (U, c)
    assert bool(jnp.all(jnp.isfinite(gamma_b)))
    print("KERNEL_OK")
</pallas_src>

<mosaic_0001>
module attributes {stable_mosaic.version = 11 : i64} {
  func.func @_lsm_score_kernel(%arg0: i32, %arg1: memref<8x1xf32, #tpu.memory_space<vmem>>, %arg2: memref<8x8x128xf32, #tpu.memory_space<vmem>>, %arg3: memref<8x8x128xf32, #tpu.memory_space<vmem>>, %arg4: memref<128x128xbf16, #tpu.memory_space<vmem>>, %arg5: memref<8x128xf32, #tpu.memory_space<vmem>>) attributes {dimension_semantics = [#tpu.dimension_semantics<parallel>], iteration_bounds = array<i64: 1>, scalar_prefetch = 0 : i64, scratch_operands = 0 : i64, tpu.core_type = #tpu.core_type<tc>, window_params = [{transform_indices = @transform_0, window_bounds = array<i64: 8, 1>}, {transform_indices = @transform_1, window_bounds = array<i64: 8, 8, 128>}, {transform_indices = @transform_2, window_bounds = array<i64: 8, 8, 128>}, {pipeline_mode = #tpu.pipeline_mode<synchronous>, transform_indices = @transform_3, window_bounds = array<i64: 128, 128>}, {transform_indices = @transform_4, window_bounds = array<i64: 8, 128>}]} {
    %c0 = arith.constant 0 : index
    %c0_0 = arith.constant 0 : index
    %c0_1 = arith.constant 0 : index
    %0 = vector.load %arg2[%c0, %c0_0, %c0_1] : memref<8x8x128xf32, #tpu.memory_space<vmem>>, vector<8x8x128xf32>
    %c0_2 = arith.constant 0 : index
    %c0_3 = arith.constant 0 : index
    %c0_4 = arith.constant 0 : index
    %1 = vector.load %arg3[%c0_2, %c0_3, %c0_4] : memref<8x8x128xf32, #tpu.memory_space<vmem>>, vector<8x8x128xf32>
    %cst = arith.constant dense<0.000000e+00> : vector<8x128xf32>
    %2 = vector.multi_reduction <add>, %0, %cst [1] : vector<8x8x128xf32> to vector<8x128xf32>
    %3 = vector.shape_cast %2 : vector<8x128xf32> to vector<8x1x128xf32>
    %4 = vector.broadcast %3 : vector<8x1x128xf32> to vector<8x8x128xf32>
    %5 = arith.subf %4, %0 : vector<8x8x128xf32>
    %6 = arith.mulf %0, %5 : vector<8x8x128xf32>
    %cst_5 = arith.constant dense<0.000000e+00> : vector<8x128xf32>
    %7 = vector.multi_reduction <add>, %1, %cst_5 [1] : vector<8x8x128xf32> to vector<8x128xf32>
    %8 = vector.shape_cast %7 : vector<8x128xf32> to vector<8x1x128xf32>
    %9 = vector.broadcast %8 : vector<8x1x128xf32> to vector<8x8x128xf32>
    %10 = arith.mulf %9, %1 : vector<8x8x128xf32>
    %11 = tpu.concatenate %6, %10 in 1 : vector<8x8x128xf32>, vector<8x8x128xf32> -> vector<8x16x128xf32>
    %12 = vector.shape_cast %11 : vector<8x16x128xf32> to vector<128x128xf32>
    %13 = arith.truncf %12 : vector<128x128xf32> to vector<128x128xbf16>
    %c0_6 = arith.constant 0 : index
    %c0_7 = arith.constant 0 : index
    %14 = vector.load %arg4[%c0_6, %c0_7] : memref<128x128xbf16, #tpu.memory_space<vmem>>, vector<128x128xbf16>
    %cst_8 = arith.constant dense<0.000000e+00> : vector<128x128xf32>
    %15 = tpu.matmul %13, %14, %cst_8 {dimension_numbers = #tpu.dot_dimension_numbers<[1], [0], [0], [1], [0, 0, 1, 1], [], []>} : vector<128x128xbf16>, vector<128x128xbf16>, vector<128x128xf32> -> vector<128x128xf32>
    %16 = vector.shape_cast %15 : vector<128x128xf32> to vector<8x16x128xf32>
    %c0_9 = arith.constant 0 : index
    %c0_10 = arith.constant 0 : index
    %17 = vector.load %arg1[%c0_9, %c0_10] : memref<8x1xf32, #tpu.memory_space<vmem>>, vector<8x1xf32>
    %18 = vector.extract_strided_slice %16 {offsets = [0, 0, 0], sizes = [8, 8, 128], strides = [1, 1, 1]} : vector<8x16x128xf32> to vector<8x8x128xf32>
    %cst_11 = arith.constant dense<0.000000e+00> : vector<8x128xf32>
    %19 = vector.multi_reduction <add>, %18, %cst_11 [1] : vector<8x8x128xf32> to vector<8x128xf32>
    %20 = vector.broadcast %17 : vector<8x1xf32> to vector<8x128xf32>
    %21 = arith.mulf %19, %20 : vector<8x128xf32>
    %22 = arith.mulf %17, %17 : vector<8x1xf32>
    %23 = vector.shape_cast %22 : vector<8x1xf32> to vector<8x1x1xf32>
    %24 = vector.broadcast %23 : vector<8x1x1xf32> to vector<8x16x128xf32>
    %25 = arith.mulf %16, %24 : vector<8x16x128xf32>
    %cst_12 = arith.constant 0.000000e+00 : f32
    %26 = vector.broadcast %cst_12 : f32 to vector<8x16x128xf32>
    %27 = arith.maximumf %25, %26 : vector<8x16x128xf32>
    %28 = math.absf %25 : vector<8x16x128xf32>
    %cst_13 = arith.constant 0.000000e+00 : f32
    %29 = vector.broadcast %cst_13 : f32 to vector<8x16x128xf32>
    %30 = arith.subf %29, %28 : vector<8x16x128xf32>
    %31 = math.exp %30 : vector<8x16x128xf32>
    %32 = math.log1p %31 : vector<8x16x128xf32>
    %33 = arith.addf %27, %32 : vector<8x16x128xf32>
    %cst_14 = arith.constant dense<0.000000e+00> : vector<8x128xf32>
    %34 = vector.multi_reduction <add>, %33, %cst_14 [1] : vector<8x16x128xf32> to vector<8x128xf32>
    %35 = arith.subf %21, %34 : vector<8x128xf32>
    %c0_15 = arith.constant 0 : index
    %c0_16 = arith.constant 0 : index
    %36 = vector.load %arg5[%c0_15, %c0_16] : memref<8x128xf32, #tpu.memory_space<vmem>>, vector<8x128xf32>
    tpu.vector_store %arg5[%c0_15, %c0_16], %35 {strides = array<i32>} : memref<8x128xf32, #tpu.memory_space<vmem>>, vector<8x128xf32>,
    return
  }
  func.func @transform_0(%arg0: i32) -> (i32, i32) {
    %c0_i32 = arith.constant 0 : i32
    %c0_i32_0 = arith.constant 0 : i32
    return %arg0, %c0_i32 : i32, i32
  }
  func.func @transform_1(%arg0: i32) -> (i32, i32, i32) {
    %c0_i32 = arith.constant 0 : i32
    %c0_i32_0 = arith.constant 0 : i32
    %c0_i32_1 = arith.constant 0 : i32
    return %arg0, %c0_i32, %c0_i32_0 : i32, i32, i32
  }
  func.func @transform_2(%arg0: i32) -> (i32, i32, i32) {
    %c0_i32 = arith.constant 0 : i32
    %c0_i32_0 = arith.constant 0 : i32
    %c0_i32_1 = arith.constant 0 : i32
    return %arg0, %c0_i32, %c0_i32_0 : i32, i32, i32
  }
  func.func @transform_3(%arg0: i32) -> (i32, i32) {
    %c0_i32 = arith.constant 0 : i32
    %c0_i32_0 = arith.constant 0 : i32
    %c0_i32_1 = arith.constant 0 : i32
    return %c0_i32, %c0_i32_0 : i32, i32
  }
  func.func @transform_4(%arg0: i32) -> (i32, i32) {
    %c0_i32 = arith.constant 0 : i32
    %c0_i32_0 = arith.constant 0 : i32
    return %arg0, %c0_i32 : i32, i32
  }
}

</mosaic_0001>

<llo_original>
// kernel: lsm_score_batched.1
$region0: #{lsm_score_batched.1}
  #allocation0 [shape = 'u32[]', space=smem, size = 0x4, offset = 0x4, fixed_abs, tag = 'smem constant byte address 0x4 - core index']
  #allocation1 [shape = 'u32[144,128]{1,0:T(1,128)}', space=vmem, size = 0x12000, scoped, tag = 'internal scratch']
  %s0 = inlined_call_operand.vmem [shape: f32[8,1], index: 0, kind: input, shape index: {}]
  %s1 = inlined_call_operand.vmem [shape: f32[8,8,128], index: 1, kind: input, shape index: {}]
  %s2 = inlined_call_operand.vmem [shape: f32[8,8,128], index: 2, kind: input, shape index: {}]
  %s3 = inlined_call_operand.vmem [shape: bf16[128,128], index: 3, kind: input, shape index: {}]
  %s4 = inlined_call_operand.vmem [shape: f32[8,128], index: 4, kind: output, shape index: {}]
  %s5 = sld [smem:[#allocation0]]
  $region26: #{lsm_score_batched.1} parent=0
    _
  %s7 = ssub.s32 1, %s5
  %s8 = scalar_select 0, %s7, %s5
  // Predicated region
  $region2: #{lsm_score_batched.1} parent=0 // pred_check
    _
  $region3: #{lsm_score_batched.1} parent=0 // pred_check_branch
    %10 = sbr.rel (0) target = $region5
  $region4: #{lsm_score_batched.1} parent=0 // pred_region
    _
  $region5: #{lsm_score_batched.1} parent=0 // pred_fallthru
    _
  // Predicated region
  $region6: #{lsm_score_batched.1} parent=0 // pred_check
    _
  $region7: #{lsm_score_batched.1} parent=0 // pred_check_branch
    %12 = sbr.rel (0) target = $region9
  $region8: #{lsm_score_batched.1} parent=0 // pred_region
    _
  $region9: #{lsm_score_batched.1} parent=0 // pred_fallthru
    _
  // Predicated region
  $region10: #{lsm_score_batched.1} parent=0 // pred_check
    _
  $region11: #{lsm_score_batched.1} parent=0 // pred_check_branch
    %14 = sbr.rel (0) target = $region13
  $region12: #{lsm_score_batched.1} parent=0 // pred_region
    _
  $region13: #{lsm_score_batched.1} parent=0 // pred_fallthru
    _
  // Predicated region
  $region14: #{lsm_score_batched.1} parent=0 // pred_check
    _
  $region15: #{lsm_score_batched.1} parent=0 // pred_check_branch
    %16 = sbr.rel (0) target = $region17
  $region16: #{lsm_score_batched.1} parent=0 // pred_region
    _
  $region17: #{lsm_score_batched.1} parent=0 // pred_fallthru
    _
  %v18 = vld [vmem:[%s1] sm:$0xff]
  %v19 = vld [vmem:[%s1 + $0x8] sm:$0xff]
  %v20 = vld [vmem:[%s1 + $0x10] sm:$0xff]
  %v21 = vld [vmem:[%s1 + $0x18] sm:$0xff]
  %v22 = vld [vmem:[%s1 + $0x20] sm:$0xff]
  %v23 = vld [vmem:[%s1 + $0x28] sm:$0xff]
  %v24 = vld [vmem:[%s1 + $0x30] sm:$0xff]
  %v25 = vld [vmem:[%s1 + $0x38] sm:$0xff]
  %v26 = vld [vmem:[%s2] sm:$0xff]
  %v27 = vld [vmem:[%s2 + $0x8] sm:$0xff]
  %v28 = vld [vmem:[%s2 + $0x10] sm:$0xff]
  %v29 = vld [vmem:[%s2 + $0x18] sm:$0xff]
  %v30 = vld [vmem:[%s2 + $0x20] sm:$0xff]
  %v31 = vld [vmem:[%s2 + $0x28] sm:$0xff]
  %v32 = vld [vmem:[%s2 + $0x30] sm:$0xff]
  %v33 = vld [vmem:[%s2 + $0x38] sm:$0xff]
  %v34 = vrot.slane %v18, 4
  %v35 = vadd.f32 %v18, %v34
  %v36 = vrot.slane %v35, 2
  %v37 = vadd.f32 %v35, %v36
  %v38 = vrot.slane %v37, 1
  %v39 = vadd.f32 %v37, %v38
  %v40 = vrot.slane %v19, 4
  %v41 = vadd.f32 %v19, %v40
  %v42 = vrot.slane %v41, 2
  %v43 = vadd.f32 %v41, %v42
  %v44 = vrot.slane %v43, 1
  %v45 = vadd.f32 %v43, %v44
  %v46 = vrot.slane %v20, 4
  %v47 = vadd.f32 %v20, %v46
  %v48 = vrot.slane %v47, 2
  %v49 = vadd.f32 %v47, %v48
  %v50 = vrot.slane %v49, 1
  %v51 = vadd.f32 %v49, %v50
  %v52 = vrot.slane %v21, 4
  %v53 = vadd.f32 %v21, %v52
  %v54 = vrot.slane %v53, 2
  %v55 = vadd.f32 %v53, %v54
  %v56 = vrot.slane %v55, 1
  %v57 = vadd.f32 %v55, %v56
  %v58 = vrot.slane %v22, 4
  %v59 = vadd.f32 %v22, %v58
  %v60 = vrot.slane %v59, 2
  %v61 = vadd.f32 %v59, %v60
  %v62 = vrot.slane %v61, 1
  %v63 = vadd.f32 %v61, %v62
  %v64 = vrot.slane %v23, 4
  %v65 = vadd.f32 %v23, %v64
  %v66 = vrot.slane %v65, 2
  %v67 = vadd.f32 %v65, %v66
  %v68 = vrot.slane %v67, 1
  %v69 = vadd.f32 %v67, %v68
  %v70 = vrot.slane %v24, 4
  %v71 = vadd.f32 %v24, %v70
  %v72 = vrot.slane %v71, 2
  %v73 = vadd.f32 %v71, %v72
  %v74 = vrot.slane %v73, 1
  %v75 = vadd.f32 %v73, %v74
  %v76 = vrot.slane %v25, 4
  %v77 = vadd.f32 %v25, %v76
  %v78 = vrot.slane %v77, 2
  %v79 = vadd.f32 %v77, %v78
  %v80 = vrot.slane %v79, 1
  %v81 = vadd.f32 %v79, %v80
  %v82 = vsub.f32 %v39, %v18
  %v83 = vsub.f32 %v45, %v19
  %v84 = vsub.f32 %v51, %v20
  %v85 = vsub.f32 %v57, %v21
  %v86 = vsub.f32 %v63, %v22
  %v87 = vsub.f32 %v69, %v23
  %v88 = vsub.f32 %v75, %v24
  %v89 = vsub.f32 %v81, %v25
  %v90 = vmul.f32 %v18, %v82
  %v91 = vmul.f32 %v19, %v83
  %v92 = vmul.f32 %v20, %v84
  %v93 = vmul.f32 %v21, %v85
  %v94 = vmul.f32 %v22, %v86
  %v95 = vmul.f32 %v23, %v87
  %v96 = vmul.f32 %v24, %v88
  %v97 = vmul.f32 %v25, %v89
  %v98 = vrot.slane %v26, 4
  %v99 = vadd.f32 %v26, %v98
  %v100 = vrot.slane %v99, 2
  %v101 = vadd.f32 %v99, %v100
  %v102 = vrot.slane %v101, 1
  %v103 = vadd.f32 %v101, %v102
  %v104 = vrot.slane %v27, 4
  %v105 = vadd.f32 %v27, %v104
  %v106 = vrot.slane %v105, 2
  %v107 = vadd.f32 %v105, %v106
  %v108 = vrot.slane %v107, 1
  %v109 = vadd.f32 %v107, %v108
  %v110 = vrot.slane %v28, 4
  %v111 = vadd.f32 %v28, %v110
  %v112 = vrot.slane %v111, 2
  %v113 = vadd.f32 %v111, %v112
  %v114 = vrot.slane %v113, 1
  %v115 = vadd.f32 %v113, %v114
  %v116 = vrot.slane %v29, 4
  %v117 = vadd.f32 %v29, %v116
  %v118 = vrot.slane %v117, 2
  %v119 = vadd.f32 %v117, %v118
  %v120 = vrot.slane %v119, 1
  %v121 = vadd.f32 %v119, %v120
  %v122 = vrot.slane %v30, 4
  %v123 = vadd.f32 %v30, %v122
  %v124 = vrot.slane %v123, 2
  %v125 = vadd.f32 %v123, %v124
  %v126 = vrot.slane %v125, 1
  %v127 = vadd.f32 %v125, %v126
  %v128 = vrot.slane %v31, 4
  %v129 = vadd.f32 %v31, %v128
  %v130 = vrot.slane %v129, 2
  %v131 = vadd.f32 %v129, %v130
  %v132 = vrot.slane %v131, 1
  %v133 = vadd.f32 %v131, %v132
  %v134 = vrot.slane %v32, 4
  %v135 = vadd.f32 %v32, %v134
  %v136 = vrot.slane %v135, 2
  %v137 = vadd.f32 %v135, %v136
  %v138 = vrot.slane %v137, 1
  %v139 = vadd.f32 %v137, %v138
  %v140 = vrot.slane %v33, 4
  %v141 = vadd.f32 %v33, %v140
  %v142 = vrot.slane %v141, 2
  %v143 = vadd.f32 %v141, %v142
  %v144 = vrot.slane %v143, 1
  %v145 = vadd.f32 %v143, %v144
  %v146 = vmul.f32 %v103, %v26
  %v147 = vmul.f32 %v109, %v27
  %v148 = vmul.f32 %v115, %v28
  %v149 = vmul.f32 %v121, %v29
  %v150 = vmul.f32 %v127, %v30
  %v151 = vmul.f32 %v133, %v31
  %v152 = vmul.f32 %v139, %v32
  %v153 = vmul.f32 %v145, %v33
  %v154 = vpack.c.bf16 %v146, %v90
  %v155 = vpack.c.bf16 %v147, %v91
  %v156 = vpack.c.bf16 %v148, %v92
  %v157 = vpack.c.bf16 %v149, %v93
  %v158 = vpack.c.bf16 %v150, %v94
  %v159 = vpack.c.bf16 %v151, %v95
  %v160 = vpack.c.bf16 %v152, %v96
  %v161 = vpack.c.bf16 %v153, %v97
  %v162 = vld [vmem:[%s3] sm:$0xf]
  %v163 = vld [vmem:[%s3 + $0x4] sm:$0xf]
  %v164 = vld [vmem:[%s3 + $0x8] sm:$0xf]
  %v165 = vld [vmem:[%s3 + $0xc] sm:$0xf]
  %v166 = vld [vmem:[%s3 + $0x10] sm:$0xf]
  %v167 = vld [vmem:[%s3 + $0x14] sm:$0xf]
  %v168 = vld [vmem:[%s3 + $0x18] sm:$0xf]
  %v169 = vld [vmem:[%s3 + $0x1c] sm:$0xf]
  %v170 = vld [vmem:[%s3 + $0x20] sm:$0xf]
  %v171 = vld [vmem:[%s3 + $0x24] sm:$0xf]
  %v172 = vld [vmem:[%s3 + $0x28] sm:$0xf]
  %v173 = vld [vmem:[%s3 + $0x2c] sm:$0xf]
  %v174 = vld [vmem:[%s3 + $0x30] sm:$0xf]
  %v175 = vld [vmem:[%s3 + $0x34] sm:$0xf]
  %v176 = vld [vmem:[%s3 + $0x38] sm:$0xf]
  %v177 = vld [vmem:[%s3 + $0x3c] sm:$0xf]
  %v194 = vunpack.c.l.b16 %v162
  %v195 = vunpack.c.l.b16 %v163
  %v196 = vunpack.c.l.b16 %v164
  %v197 = vunpack.c.l.b16 %v165
  %v198 = vunpack.c.l.b16 %v166
  %v199 = vunpack.c.l.b16 %v167
  %v200 = vunpack.c.l.b16 %v168
  %v201 = vunpack.c.l.b16 %v169
  %v202 = vunpack.c.l.b16 %v170
  %v203 = vunpack.c.l.b16 %v171
  %v204 = vunpack.c.l.b16 %v172
  %v205 = vunpack.c.l.b16 %v173
  %v206 = vunpack.c.l.b16 %v174
  %v207 = vunpack.c.l.b16 %v175
  %v208 = vunpack.c.l.b16 %v176
  %v209 = vunpack.c.l.b16 %v177
  %v210 = vpack.c.b16 %v195, %v194
  %v211 = vpack.c.b16 %v197, %v196
  %v212 = vpack.c.b16 %v199, %v198
  %v213 = vpack.c.b16 %v201, %v200
  %v214 = vpack.c.b16 %v203, %v202
  %v215 = vpack.c.b16 %v205, %v204
  %v216 = vpack.c.b16 %v207, %v206
  %v217 = vpack.c.b16 %v209, %v208
  %226 = vmatprep.subr.bf16.mxu0 0
  %227 = vmatpush1.bf16.msra.mxu0 %v210
  %228 = vmatprep.subr.bf16.mxu0 0
  %229 = vmatpush1.bf16.msra.mxu0 %v211
  %230 = vmatprep.subr.bf16.mxu0 0
  %231 = vmatpush1.bf16.msra.mxu0 %v212
  %232 = vmatprep.subr.bf16.mxu0 0
  %233 = vmatpush1.bf16.msra.mxu0 %v213
  %234 = vmatprep.subr.bf16.mxu0 0
  %235 = vmatpush1.bf16.msra.mxu0 %v214
  %236 = vmatprep.subr.bf16.mxu0 0
  %237 = vmatpush1.bf16.msra.mxu0 %v215
  %238 = vmatprep.subr.bf16.mxu0 0
  %239 = vmatpush1.bf16.msra.mxu0 %v216
  %240 = vmatprep.subr.bf16.mxu0 0
  %241 = vmatpush1.bf16.msra.mxu0 %v217
  %242 = vmatprep.subr.bf16.mxu0 0
  %243 = vmatpush1.bf16.msra.mxu0 0
  %244 = vmatprep.subr.bf16.mxu0 0
  %245 = vmatpush1.bf16.msra.mxu0 0
  %246 = vmatprep.subr.bf16.mxu0 0
  %247 = vmatpush1.bf16.msra.mxu0 0
  %248 = vmatprep.subr.bf16.mxu0 0
  %249 = vmatpush1.bf16.msra.mxu0 0
  %250 = vmatprep.subr.bf16.mxu0 0
  %251 = vmatpush1.bf16.msra.mxu0 0
  %252 = vmatprep.subr.bf16.mxu0 0
  %253 = vmatpush1.bf16.msra.mxu0 0
  %254 = vmatprep.subr.bf16.mxu0 0
  %255 = vmatpush1.bf16.msra.mxu0 0
  %256 = vmatprep.subr.bf16.mxu0 0
  %257 = vmatpush1.bf16.msra.mxu0 0
  %258 = vmatprep.mubr.bf16.mxu0 0
  %259 = vmatmul.mubr.bf16.gmra.mrb[0].mxu0 %v154
  %v260 = vpop.f32.mrb[0].mxu0
  %v261 = vadd.f32 0.0, %v260
  %v262 = vpop.f32.mrb[0].mxu0
  %v263 = vpop.f32.mrb[0].mxu0
  %v264 = vadd.f32 0.0, %v263
  %v265 = vpop.f32.mrb[0].mxu0
  %266 = vmatprep.mubr.bf16.mxu0 0
  %267 = vmatmul.mubr.bf16.gmra.mrb[0].mxu0 %v155
  %v268 = vpop.f32.mrb[0].mxu0
  %v269 = vadd.f32 0.0, %v268
  %v270 = vpop.f32.mrb[0].mxu0
  %v271 = vpop.f32.mrb[0].mxu0
  %v272 = vadd.f32 0.0, %v271
  %v273 = vpop.f32.mrb[0].mxu0
  %274 = vmatprep.mubr.bf16.mxu0 0
  %275 = vmatmul.mubr.bf16.gmra.mrb[0].mxu0 %v156
  %v276 = vpop.f32.mrb[0].mxu0
  %v277 = vadd.f32 0.0, %v276
  %v278 = vpop.f32.mrb[0].mxu0
  %v279 = vpop.f32.mrb[0].mxu0
  %v280 = vadd.f32 0.0, %v279
  %v281 = vpop.f32.mrb[0].mxu0
  %282 = vmatprep.mubr.bf16.mxu0 0
  %283 = vmatmul.mubr.bf16.gmra.mrb[0].mxu0 %v157
  %v284 = vpop.f32.mrb[0].mxu0
  %v285 = vadd.f32 0.0, %v284
  %v286 = vpop.f32.mrb[0].mxu0
  %v287 = vpop.f32.mrb[0].mxu0
  %v288 = vadd.f32 0.0, %v287
  %v289 = vpop.f32.mrb[0].mxu0
  %290 = vmatprep.mubr.bf16.mxu0 0
  %291 = vmatmul.mubr.bf16.gmra.mrb[0].mxu0 %v158
  %v292 = vpop.f32.mrb[0].mxu0
  %v293 = vadd.f32 0.0, %v292
  %v294 = vpop.f32.mrb[0].mxu0
  %v295 = vpop.f32.mrb[0].mxu0
  %v296 = vadd.f32 0.0, %v295
  %v297 = vpop.f32.mrb[0].mxu0
  %298 = vmatprep.mubr.bf16.mxu0 0
  %299 = vmatmul.mubr.bf16.gmra.mrb[0].mxu0 %v159
  %v300 = vpop.f32.mrb[0].mxu0
  %v301 = vadd.f32 0.0, %v300
  %v302 = vpop.f32.mrb[0].mxu0
  %v303 = vpop.f32.mrb[0].mxu0
  %v304 = vadd.f32 0.0, %v303
  %v305 = vpop.f32.mrb[0].mxu0
  %306 = vmatprep.mubr.bf16.mxu0 0
  %307 = vmatmul.mubr.bf16.gmra.mrb[0].mxu0 %v160
  %v308 = vpop.f32.mrb[0].mxu0
  %v309 = vadd.f32 0.0, %v308
  %v310 = vpop.f32.mrb[0].mxu0
  %v311 = vpop.f32.mrb[0].mxu0
  %v312 = vadd.f32 0.0, %v311
  %v313 = vpop.f32.mrb[0].mxu0
  %314 = vmatprep.mubr.bf16.mxu0 0
  %315 = vmatmul.mubr.bf16.gmra.mrb[0].mxu0 %v161
  %v316 = vpop.f32.mrb[0].mxu0
  %v317 = vadd.f32 0.0, %v316
  %v318 = vpop.f32.mrb[0].mxu0
  %v319 = vpop.f32.mrb[0].mxu0
  %v320 = vadd.f32 0.0, %v319
  %v321 = vpop.f32.mrb[0].mxu0
  %322 = vdwg.mxu0
  %v323 = vld [vmem:[%s0] sm:$0xff]
  %v324 = vrot.slane %v261, 4
  %v325 = vadd.f32 %v261, %v324
  %v326 = vrot.slane %v325, 2
  %v327 = vadd.f32 %v325, %v326
  %v328 = vrot.slane %v327, 1
  %v329 = vadd.f32 %v327, %v328
  %v330 = vrot.slane %v269, 4
  %v331 = vadd.f32 %v269, %v330
  %v332 = vrot.slane %v331, 2
  %v333 = vadd.f32 %v331, %v332
  %v334 = vrot.slane %v333, 1
  %v335 = vadd.f32 %v333, %v334
  %v336 = vrot.slane %v277, 4
  %v337 = vadd.f32 %v277, %v336
  %v338 = vrot.slane %v337, 2
  %v339 = vadd.f32 %v337, %v338
  %v340 = vrot.slane %v339, 1
  %v341 = vadd.f32 %v339, %v340
  %v342 = vrot.slane %v285, 4
  %v343 = vadd.f32 %v285, %v342
  %v344 = vrot.slane %v343, 2
  %v345 = vadd.f32 %v343, %v344
  %v346 = vrot.slane %v345, 1
  %v347 = vadd.f32 %v345, %v346
  %v348 = vrot.slane %v293, 4
  %v349 = vadd.f32 %v293, %v348
  %v350 = vrot.slane %v349, 2
  %v351 = vadd.f32 %v349, %v350
  %v352 = vrot.slane %v351, 1
  %v353 = vadd.f32 %v351, %v352
  %v354 = vrot.slane %v301, 4
  %v355 = vadd.f32 %v301, %v354
  %v356 = vrot.slane %v355, 2
  %v357 = vadd.f32 %v355, %v356
  %v358 = vrot.slane %v357, 1
  %v359 = vadd.f32 %v357, %v358
  %v360 = vrot.slane %v309, 4
  %v361 = vadd.f32 %v309, %v360
  %v362 = vrot.slane %v361, 2
  %v363 = vadd.f32 %v361, %v362
  %v364 = vrot.slane %v363, 1
  %v365 = vadd.f32 %v363, %v364
  %v366 = vrot.slane %v317, 4
  %v367 = vadd.f32 %v317, %v366
  %v368 = vrot.slane %v367, 2
  %v369 = vadd.f32 %v367, %v368
  %v370 = vrot.slane %v369, 1
  %v371 = vadd.f32 %v369, %v370
  %373 = vset.pattern.permute.xlu0 0
  %374 = vperm.xlu0 %373, %v323
  %v375 = vpop.permute.xlu0 %374
  %v376 = vrot.slane %v375, 1
  %v377 = vrot.slane %v375, 2
  %v378 = vrot.slane %v375, 3
  %v379 = vrot.slane %v375, 4
  %v380 = vrot.slane %v375, 5
  %v381 = vrot.slane %v375, 6
  %v382 = vrot.slane %v375, 7
  %v391 = vmul.f32 %v329, %v375
  %v392 = vmul.f32 %v335, %v376
  %v393 = vmul.f32 %v341, %v377
  %v394 = vmul.f32 %v347, %v378
  %v395 = vmul.f32 %v353, %v379
  %v396 = vmul.f32 %v359, %v380
  %v397 = vmul.f32 %v365, %v381
  %v398 = vmul.f32 %v371, %v382
  %v399 = vmul.f32 %v323, %v323
  %v401 = vcombine.high %v399, %v399
  %v403 = vunpack.c.l.s4 1966171168
  %v404 = vunpack.c.0.s8 %v403
  %v405 = vlaneseq
  %v406 = vshrl.u32 %v405, 7
  %v407 = vsub.s32 %v404, %v406
  %v408 = vrot.slane %v399, %v407
  %v410 = vunpack.c.l.s4 1966171168
  %v411 = vunpack.c.0.s8 %v410
  %v412 = vlaneseq
  %v413 = vshrl.u32 %v412, 7
  %v414 = vsub.s32 %v411, %v413
  %v415 = vrot.slane %v401, %v414
  %v416 = vcombine.high %v408, %v408
  %v417 = vcombine.high %v415, %v415
  %v419 = vunpack.c.l.s4 1966171168
  %v420 = vunpack.c.0.s8 %v419
  %v421 = vlaneseq
  %v422 = vshrl.u32 %v421, 7
  %v423 = vsub.s32 %v420, %v422
  %v424 = vrot.slane %v408, %v423
  %v426 = vunpack.c.l.s4 1966171168
  %v427 = vunpack.c.0.s8 %v426
  %v428 = vlaneseq
  %v429 = vshrl.u32 %v428, 7
  %v430 = vsub.s32 %v427, %v429
  %v431 = vrot.slane %v415, %v430
  %v433 = vunpack.c.l.s4 1966171168
  %v434 = vunpack.c.0.s8 %v433
  %v435 = vlaneseq
  %v436 = vshrl.u32 %v435, 7
  %v437 = vsub.s32 %v434, %v436
  %v438 = vrot.slane %v416, %v437
  %v440 = vunpack.c.l.s4 1966171168
  %v441 = vunpack.c.0.s8 %v440
  %v442 = vlaneseq
  %v443 = vshrl.u32 %v442, 7
  %v444 = vsub.s32 %v441, %v443
  %v445 = vrot.slane %v417, %v444
  %v446 = vcombine.high %v424, %v424
  %v447 = vcombine.high %v431, %v431
  %v448 = vcombine.high %v438, %v438
  %v449 = vcombine.high %v445, %v445
  %v450 = vlaneseq
  %v451 = vshrl.u32 %v450, 7
  %v452 = vsub.s32 0, %v451
  %v453 = vrot.slane %v424, %v452
  %v454 = vlaneseq
  %v455 = vshrl.u32 %v454, 7
  %v456 = vsub.s32 0, %v455
  %v457 = vrot.slane %v438, %v456
  %v458 = vlaneseq
  %v459 = vshrl.u32 %v458, 7
  %v460 = vsub.s32 0, %v459
  %v461 = vrot.slane %v446, %v460
  %v462 = vlaneseq
  %v463 = vshrl.u32 %v462, 7
  %v464 = vsub.s32 0, %v463
  %v465 = vrot.slane %v448, %v464
  %v466 = vlaneseq
  %v467 = vshrl.u32 %v466, 7
  %v468 = vsub.s32 0, %v467
  %v469 = vrot.slane %v431, %v468
  %v470 = vlaneseq
  %v471 = vshrl.u32 %v470, 7
  %v472 = vsub.s32 0, %v471
  %v473 = vrot.slane %v445, %v472
  %v474 = vlaneseq
  %v475 = vshrl.u32 %v474, 7
  %v476 = vsub.s32 0, %v475
  %v477 = vrot.slane %v447, %v476
  %v478 = vlaneseq
  %v479 = vshrl.u32 %v478, 7
  %v480 = vsub.s32 0, %v479
  %v481 = vrot.slane %v449, %v480
  %482 = vset.pattern.permute.xlu0 0
  %483 = vperm.xlu0 %482, %v453
  %v484 = vpop.permute.xlu0 %483
  %486 = vset.pattern.permute.xlu0 0
  %487 = vperm.xlu0 %486, %v457
  %v488 = vpop.permute.xlu0 %487
  %490 = vset.pattern.permute.xlu0 0
  %491 = vperm.xlu0 %490, %v461
  %v492 = vpop.permute.xlu0 %491
  %494 = vset.pattern.permute.xlu0 0
  %495 = vperm.xlu0 %494, %v465
  %v496 = vpop.permute.xlu0 %495
  %498 = vset.pattern.permute.xlu0 0
  %499 = vperm.xlu0 %498, %v469
  %v500 = vpop.permute.xlu0 %499
  %502 = vset.pattern.permute.xlu0 0
  %503 = vperm.xlu0 %502, %v473
  %v504 = vpop.permute.xlu0 %503
  %506 = vset.pattern.permute.xlu0 0
  %507 = vperm.xlu0 %506, %v477
  %v508 = vpop.permute.xlu0 %507
  %510 = vset.pattern.permute.xlu0 0
  %511 = vperm.xlu0 %510, %v481
  %v512 = vpop.permute.xlu0 %511
  %v514 = vmul.f32 %v261, %v484
  %v515 = vmul.f32 %v264, %v484
  %v516 = vmul.f32 %v269, %v488
  %v517 = vmul.f32 %v272, %v488
  %v518 = vmul.f32 %v277, %v492
  %v519 = vmul.f32 %v280, %v492
  %v520 = vmul.f32 %v285, %v496
  %v521 = vmul.f32 %v288, %v496
  %v522 = vmul.f32 %v293, %v500
  %v523 = vmul.f32 %v296, %v500
  %v524 = vmul.f32 %v301, %v504
  %v525 = vmul.f32 %v304, %v504
  %v526 = vmul.f32 %v309, %v508
  %v527 = vmul.f32 %v312, %v508
  %v528 = vmul.f32 %v317, %v512
  %v529 = vmul.f32 %v320, %v512
  %v530 = vmax.f32 %v514, 0.0
  %v531 = vmax.f32 %v515, 0.0
  %v532 = vmax.f32 %v516, 0.0
  %v533 = vmax.f32 %v517, 0.0
  %v534 = vmax.f32 %v518, 0.0
  %v535 = vmax.f32 %v519, 0.0
  %v536 = vmax.f32 %v520, 0.0
  %v537 = vmax.f32 %v521, 0.0
  %v538 = vmax.f32 %v522, 0.0
  %v539 = vmax.f32 %v523, 0.0
  %v540 = vmax.f32 %v524, 0.0
  %v541 = vmax.f32 %v525, 0.0
  %v542 = vmax.f32 %v526, 0.0
  %v543 = vmax.f32 %v527, 0.0
  %v544 = vmax.f32 %v528, 0.0
  %v545 = vmax.f32 %v529, 0.0
  %v546 = vand.u32 2147483647, %v514
  %v547 = vand.u32 2147483647, %v515
  %v548 = vand.u32 2147483647, %v516
  %v549 = vand.u32 2147483647, %v517
  %v550 = vand.u32 2147483647, %v518
  %v551 = vand.u32 2147483647, %v519
  %v552 = vand.u32 2147483647, %v520
  %v553 = vand.u32 2147483647, %v521
  %v554 = vand.u32 2147483647, %v522
  %v555 = vand.u32 2147483647, %v523
  %v556 = vand.u32 2147483647, %v524
  %v557 = vand.u32 2147483647, %v525
  %v558 = vand.u32 2147483647, %v526
  %v559 = vand.u32 2147483647, %v527
  %v560 = vand.u32 2147483647, %v528
  %v561 = vand.u32 2147483647, %v529
  %v562 = vsub.f32 0.0, %v546
  %v563 = vsub.f32 0.0, %v547
  %v564 = vsub.f32 0.0, %v548
  %v565 = vsub.f32 0.0, %v549
  %v566 = vsub.f32 0.0, %v550
  %v567 = vsub.f32 0.0, %v551
  %v568 = vsub.f32 0.0, %v552
  %v569 = vsub.f32 0.0, %v553
  %v570 = vsub.f32 0.0, %v554
  %v571 = vsub.f32 0.0, %v555
  %v572 = vsub.f32 0.0, %v556
  %v573 = vsub.f32 0.0, %v557
  %v574 = vsub.f32 0.0, %v558
  %v575 = vsub.f32 0.0, %v559
  %v576 = vsub.f32 0.0, %v560
  %v577 = vsub.f32 0.0, %v561
  %v578 = vmul.f32 %v562, 1.442695
  %v579 = vpow.pop %v578
  %v580 = vmul.f32 %v563, 1.442695
  %v581 = vpow.pop %v580
  %v582 = vmul.f32 %v564, 1.442695
  %v583 = vpow.pop %v582
  %v584 = vmul.f32 %v565, 1.442695
  %v585 = vpow.pop %v584
  %v586 = vmul.f32 %v566, 1.442695
  %v587 = vpow.pop %v586
  %v588 = vmul.f32 %v567, 1.442695
  %v589 = vpow.pop %v588
  %v590 = vmul.f32 %v568, 1.442695
  %v591 = vpow.pop %v590
  %v592 = vmul.f32 %v569, 1.442695
  %v593 = vpow.pop %v592
  %v594 = vmul.f32 %v570, 1.442695
  %v595 = vpow.pop %v594
  %v596 = vmul.f32 %v571, 1.442695
  %v597 = vpow.pop %v596
  %v598 = vmul.f32 %v572, 1.442695
  %v599 = vpow.pop %v598
  %v600 = vmul.f32 %v573, 1.442695
  %v601 = vpow.pop %v600
  %v602 = vmul.f32 %v574, 1.442695
  %v603 = vpow.pop %v602
  %v604 = vmul.f32 %v575, 1.442695
  %v605 = vpow.pop %v604
  %v606 = vmul.f32 %v576, 1.442695
  %v607 = vpow.pop %v606
  %v608 = vmul.f32 %v577, 1.442695
  %v609 = vpow.pop %v608
  %v610 = vadd.f32 %v579, 1.0
  %v611 = vlog2.pop %v610
  %v612 = vmul.f32 %v611, 0.6931472
  %v613 = vmul.f32 -0.5, %v579
  %v614 = vadd.f32 %v613, 1.0
  %v615 = vmul.f32 %v614, %v579
  %v616 = vand.u32 2147483647, %v579
  %vm617 = vcmp.lt.f32.partialorder %v616, 0.0004427343
  %v618 = vsel %vm617, %v615, %v612
  %v619 = vadd.f32 %v581, 1.0
  %v620 = vlog2.pop %v619
  %v621 = vmul.f32 %v620, 0.6931472
  %v622 = vmul.f32 -0.5, %v581
  %v623 = vadd.f32 %v622, 1.0
  %v624 = vmul.f32 %v623, %v581
  %v625 = vand.u32 2147483647, %v581
  %vm626 = vcmp.lt.f32.partialorder %v625, 0.0004427343
  %v627 = vsel %vm626, %v624, %v621
  %v628 = vadd.f32 %v583, 1.0
  %v629 = vlog2.pop %v628
  %v630 = vmul.f32 %v629, 0.6931472
  %v631 = vmul.f32 -0.5, %v583
  %v632 = vadd.f32 %v631, 1.0
  %v633 = vmul.f32 %v632, %v583
  %v634 = vand.u32 2147483647, %v583
  %vm635 = vcmp.lt.f32.partialorder %v634, 0.0004427343
  %v636 = vsel %vm635, %v633, %v630
  %v637 = vadd.f32 %v585, 1.0
  %v638 = vlog2.pop %v637
  %v639 = vmul.f32 %v638, 0.6931472
  %v640 = vmul.f32 -0.5, %v585
  %v641 = vadd.f32 %v640, 1.0
  %v642 = vmul.f32 %v641, %v585
  %v643 = vand.u32 2147483647, %v585
  %vm644 = vcmp.lt.f32.partialorder %v643, 0.0004427343
  %v645 = vsel %vm644, %v642, %v639
  %v646 = vadd.f32 %v587, 1.0
  %v647 = vlog2.pop %v646
  %v648 = vmul.f32 %v647, 0.6931472
  %v649 = vmul.f32 -0.5, %v587
  %v650 = vadd.f32 %v649, 1.0
  %v651 = vmul.f32 %v650, %v587
  %v652 = vand.u32 2147483647, %v587
  %vm653 = vcmp.lt.f32.partialorder %v652, 0.0004427343
  %v654 = vsel %vm653, %v651, %v648
  %v655 = vadd.f32 %v589, 1.0
  %v656 = vlog2.pop %v655
  %v657 = vmul.f32 %v656, 0.6931472
  %v658 = vmul.f32 -0.5, %v589
  %v659 = vadd.f32 %v658, 1.0
  %v660 = vmul.f32 %v659, %v589
  %v661 = vand.u32 2147483647, %v589
  %vm662 = vcmp.lt.f32.partialorder %v661, 0.0004427343
  %v663 = vsel %vm662, %v660, %v657
  %v664 = vadd.f32 %v591, 1.0
  %v665 = vlog2.pop %v664
  %v666 = vmul.f32 %v665, 0.6931472
  %v667 = vmul.f32 -0.5, %v591
  %v668 = vadd.f32 %v667, 1.0
  %v669 = vmul.f32 %v668, %v591
  %v670 = vand.u32 2147483647, %v591
  %vm671 = vcmp.lt.f32.partialorder %v670, 0.0004427343
  %v672 = vsel %vm671, %v669, %v666
  %v673 = vadd.f32 %v593, 1.0
  %v674 = vlog2.pop %v673
  %v675 = vmul.f32 %v674, 0.6931472
  %v676 = vmul.f32 -0.5, %v593
  %v677 = vadd.f32 %v676, 1.0
  %v678 = vmul.f32 %v677, %v593
  %v679 = vand.u32 2147483647, %v593
  %vm680 = vcmp.lt.f32.partialorder %v679, 0.0004427343
  %v681 = vsel %vm680, %v678, %v675
  %v682 = vadd.f32 %v595, 1.0
  %v683 = vlog2.pop %v682
  %v684 = vmul.f32 %v683, 0.6931472
  %v685 = vmul.f32 -0.5, %v595
  %v686 = vadd.f32 %v685, 1.0
  %v687 = vmul.f32 %v686, %v595
  %v688 = vand.u32 2147483647, %v595
  %vm689 = vcmp.lt.f32.partialorder %v688, 0.0004427343
  %v690 = vsel %vm689, %v687, %v684
  %v691 = vadd.f32 %v597, 1.0
  %v692 = vlog2.pop %v691
  %v693 = vmul.f32 %v692, 0.6931472
  %v694 = vmul.f32 -0.5, %v597
  %v695 = vadd.f32 %v694, 1.0
  %v696 = vmul.f32 %v695, %v597
  %v697 = vand.u32 2147483647, %v597
  %vm698 = vcmp.lt.f32.partialorder %v697, 0.0004427343
  %v699 = vsel %vm698, %v696, %v693
  %v700 = vadd.f32 %v599, 1.0
  %v701 = vlog2.pop %v700
  %v702 = vmul.f32 %v701, 0.6931472
  %v703 = vmul.f32 -0.5, %v599
  %v704 = vadd.f32 %v703, 1.0
  %v705 = vmul.f32 %v704, %v599
  %v706 = vand.u32 2147483647, %v599
  %vm707 = vcmp.lt.f32.partialorder %v706, 0.0004427343
  %v708 = vsel %vm707, %v705, %v702
  %v709 = vadd.f32 %v601, 1.0
  %v710 = vlog2.pop %v709
  %v711 = vmul.f32 %v710, 0.6931472
  %v712 = vmul.f32 -0.5, %v601
  %v713 = vadd.f32 %v712, 1.0
  %v714 = vmul.f32 %v713, %v601
  %v715 = vand.u32 2147483647, %v601
  %vm716 = vcmp.lt.f32.partialorder %v715, 0.0004427343
  %v717 = vsel %vm716, %v714, %v711
  %v718 = vadd.f32 %v603, 1.0
  %v719 = vlog2.pop %v718
  %v720 = vmul.f32 %v719, 0.6931472
  %v721 = vmul.f32 -0.5, %v603
  %v722 = vadd.f32 %v721, 1.0
  %v723 = vmul.f32 %v722, %v603
  %v724 = vand.u32 2147483647, %v603
  %vm725 = vcmp.lt.f32.partialorder %v724, 0.0004427343
  %v726 = vsel %vm725, %v723, %v720
  %v727 = vadd.f32 %v605, 1.0
  %v728 = vlog2.pop %v727
  %v729 = vmul.f32 %v728, 0.6931472
  %v730 = vmul.f32 -0.5, %v605
  %v731 = vadd.f32 %v730, 1.0
  %v732 = vmul.f32 %v731, %v605
  %v733 = vand.u32 2147483647, %v605
  %vm734 = vcmp.lt.f32.partialorder %v733, 0.0004427343
  %v735 = vsel %vm734, %v732, %v729
  %v736 = vadd.f32 %v607, 1.0
  %v737 = vlog2.pop %v736
  %v738 = vmul.f32 %v737, 0.6931472
  %v739 = vmul.f32 -0.5, %v607
  %v740 = vadd.f32 %v739, 1.0
  %v741 = vmul.f32 %v740, %v607
  %v742 = vand.u32 2147483647, %v607
  %vm743 = vcmp.lt.f32.partialorder %v742, 0.0004427343
  %v744 = vsel %vm743, %v741, %v738
  %v745 = vadd.f32 %v609, 1.0
  %v746 = vlog2.pop %v745
  %v747 = vmul.f32 %v746, 0.6931472
  %v748 = vmul.f32 -0.5, %v609
  %v749 = vadd.f32 %v748, 1.0
  %v750 = vmul.f32 %v749, %v609
  %v751 = vand.u32 2147483647, %v609
  %vm752 = vcmp.lt.f32.partialorder %v751, 0.0004427343
  %v753 = vsel %vm752, %v750, %v747
  %v754 = vadd.f32 %v530, %v618
  %v755 = vadd.f32 %v531, %v627
  %v756 = vadd.f32 %v532, %v636
  %v757 = vadd.f32 %v533, %v645
  %v758 = vadd.f32 %v534, %v654
  %v759 = vadd.f32 %v535, %v663
  %v760 = vadd.f32 %v536, %v672
  %v761 = vadd.f32 %v537, %v681
  %v762 = vadd.f32 %v538, %v690
  %v763 = vadd.f32 %v539, %v699
  %v764 = vadd.f32 %v540, %v708
  %v765 = vadd.f32 %v541, %v717
  %v766 = vadd.f32 %v542, %v726
  %v767 = vadd.f32 %v543, %v735
  %v768 = vadd.f32 %v544, %v744
  %v769 = vadd.f32 %v545, %v753
  %v770 = vadd.f32 %v754, %v755
  %v771 = vrot.slane %v770, 4
  %v772 = vadd.f32 %v770, %v771
  %v773 = vrot.slane %v772, 2
  %v774 = vadd.f32 %v772, %v773
  %v775 = vrot.slane %v774, 1
  %v776 = vadd.f32 %v774, %v775
  %v777 = vadd.f32 %v756, %v757
  %v778 = vrot.slane %v777, 4
  %v779 = vadd.f32 %v777, %v778
  %v780 = vrot.slane %v779, 2
  %v781 = vadd.f32 %v779, %v780
  %v782 = vrot.slane %v781, 1
  %v783 = vadd.f32 %v781, %v782
  %v784 = vadd.f32 %v758, %v759
  %v785 = vrot.slane %v784, 4
  %v786 = vadd.f32 %v784, %v785
  %v787 = vrot.slane %v786, 2
  %v788 = vadd.f32 %v786, %v787
  %v789 = vrot.slane %v788, 1
  %v790 = vadd.f32 %v788, %v789
  %v791 = vadd.f32 %v760, %v761
  %v792 = vrot.slane %v791, 4
  %v793 = vadd.f32 %v791, %v792
  %v794 = vrot.slane %v793, 2
  %v795 = vadd.f32 %v793, %v794
  %v796 = vrot.slane %v795, 1
  %v797 = vadd.f32 %v795, %v796
  %v798 = vadd.f32 %v762, %v763
  %v799 = vrot.slane %v798, 4
  %v800 = vadd.f32 %v798, %v799
  %v801 = vrot.slane %v800, 2
  %v802 = vadd.f32 %v800, %v801
  %v803 = vrot.slane %v802, 1
  %v804 = vadd.f32 %v802, %v803
  %v805 = vadd.f32 %v764, %v765
  %v806 = vrot.slane %v805, 4
  %v807 = vadd.f32 %v805, %v806
  %v808 = vrot.slane %v807, 2
  %v809 = vadd.f32 %v807, %v808
  %v810 = vrot.slane %v809, 1
  %v811 = vadd.f32 %v809, %v810
  %v812 = vadd.f32 %v766, %v767
  %v813 = vrot.slane %v812, 4
  %v814 = vadd.f32 %v812, %v813
  %v815 = vrot.slane %v814, 2
  %v816 = vadd.f32 %v814, %v815
  %v817 = vrot.slane %v816, 1
  %v818 = vadd.f32 %v816, %v817
  %v819 = vadd.f32 %v768, %v769
  %v820 = vrot.slane %v819, 4
  %v821 = vadd.f32 %v819, %v820
  %v822 = vrot.slane %v821, 2
  %v823 = vadd.f32 %v821, %v822
  %v824 = vrot.slane %v823, 1
  %v825 = vadd.f32 %v823, %v824
  %v826 = vsub.f32 %v391, %v776
  %v827 = vsub.f32 %v392, %v783
  %v828 = vsub.f32 %v393, %v790
  %v829 = vsub.f32 %v394, %v797
  %v830 = vsub.f32 %v395, %v804
  %v831 = vsub.f32 %v396, %v811
  %v832 = vsub.f32 %v397, %v818
  %v833 = vsub.f32 %v398, %v825
  %v842 = vrot.slane %v827, 7
  %vm843 = vcmask 1041409
  %v844 = vsel %vm843, %v842, %v826
  %v845 = vrot.slane %v828, 6
  %vm846 = vcmask 1042434
  %v847 = vsel %vm846, %v845, %v844
  %v848 = vrot.slane %v829, 5
  %vm849 = vcmask 1043459
  %v850 = vsel %vm849, %v848, %v847
  %v851 = vrot.slane %v830, 4
  %vm852 = vcmask 1044484
  %v853 = vsel %vm852, %v851, %v850
  %v854 = vrot.slane %v831, 3
  %vm855 = vcmask 1045509
  %v856 = vsel %vm855, %v854, %v853
  %v857 = vrot.slane %v832, 2
  %vm858 = vcmask 1046534
  %v859 = vsel %vm858, %v857, %v856
  %v860 = vrot.slane %v833, 1
  %vm861 = vcmask 1047559
  %v862 = vsel %vm861, %v860, %v859
  %864 = vst [vmem:[%s4] sm:$0xff] %v862
  // Predicated region
  $region18: #{lsm_score_batched.1} parent=0 // pred_check
    _
  $region19: #{lsm_score_batched.1} parent=0 // pred_check_branch
    %866 = sbr.rel (0) target = $region21
  $region20: #{lsm_score_batched.1} parent=0 // pred_region
    _
  $region21: #{lsm_score_batched.1} parent=0 // pred_fallthru
    _
  // Predicated region
  $region22: #{lsm_score_batched.1} parent=0 // pred_check
    _
  $region23: #{lsm_score_batched.1} parent=0 // pred_check_branch
    %868 = sbr.rel (0) target = $region25
  $region24: #{lsm_score_batched.1} parent=0 // pred_region
    _
  $region25: #{lsm_score_batched.1} parent=0 // pred_fallthru
    _

</llo_original>
